<compile_context>
chip_gen: v7x
topology: tpu7x:2x2x1
jax: 0.10.0
libtpu: 0.0.40
codegen_flags: <defaults>
</compile_context>

<pallas_src>
import functools

import jax
import jax.numpy as jnp
from jax.experimental import pallas as pl
from jax.experimental.pallas import tpu as pltpu

EPS = 1e-6

# Double-buffered tile budget for the "big" tensors of one pallas_call.
# Conservative enough for v7x (64 MiB physical VMEM); v5e/v6e have headroom.
_TILE_BUDGET = 32 * 1024 * 1024
_MAX_BLOCK_ROWS = 1024
_LANE = 1024  # lane-dense width for the elementwise residual(+dropout) kernel


def _round_up(x, m):
    return (x + m - 1) // m * m


def _pick_block_rows(row_bytes_per_tensor, n_big_tensors, needed_rows):
    """Largest multiple-of-8 row tile whose double-buffered tiles fit the budget."""
    per_row = 2 * n_big_tensors * row_bytes_per_tensor  # 2 = double buffering
    br = max(8, min(_MAX_BLOCK_ROWS, _TILE_BUDGET // max(per_row, 1)))
    br = (br // 8) * 8
    return max(8, min(br, needed_rows))


def _vmem_limit(block_rows, row_bytes_per_tensor, n_big_tensors):
    need = 2 * n_big_tensors * block_rows * row_bytes_per_tensor
    return int(max(need + (2 << 20), 16 * 1024 * 1024))


# ----------------------------- LayerNorm kernel ----------------------------- #
def _layernorm_kernel(x_ref, g_ref, b_ref, o_ref):
    x = x_ref[...].astype(jnp.float32)                       # (block_rows, D)
    d = x.shape[-1]
    mean = jnp.mean(x, axis=-1, keepdims=True)
    centered = x - mean
    # torch.std default: unbiased (Bessel, divide by D-1); eps added to the std.
    denom = float(max(d - 1, 1))
    var = jnp.sum(centered * centered, axis=-1, keepdims=True) * (1.0 / denom)
    inv_std = 1.0 / (jnp.sqrt(var) + EPS)                    # one divide per row
    y = (g_ref[...].astype(jnp.float32) * (centered * inv_std)
         + b_ref[...].astype(jnp.float32))
    o_ref[...] = y.astype(o_ref.dtype)


def layernorm(x, gamma, beta):
    rows, d = x.shape
    itemsize = max(x.dtype.itemsize, 4)
    needed_rows = _round_up(rows, 8)
    block_rows = _pick_block_rows(d * itemsize, n_big_tensors=2,
                                  needed_rows=needed_rows)
    rows_pad = _round_up(rows, block_rows)
    xp = jnp.pad(x, ((0, rows_pad - rows), (0, 0))) if rows_pad != rows else x

    spec = pl.BlockSpec((block_rows, d), lambda i: (i, 0))
    param_spec = pl.BlockSpec((1, d), lambda i: (0, 0))
    out = pl.pallas_call(
        _layernorm_kernel,
        out_shape=jax.ShapeDtypeStruct((rows_pad, d), x.dtype),
        grid=(rows_pad // block_rows,),
        in_specs=[spec, param_spec, param_spec],
        out_specs=spec,
        compiler_params=pltpu.CompilerParams(
            dimension_semantics=("parallel",),
            vmem_limit_bytes=_vmem_limit(block_rows, d * itemsize, 2),
        ),
    )(xp, gamma.reshape(1, d), beta.reshape(1, d))
    return out[:rows] if rows_pad != rows else out


# ---------------------- residual + (inverted) dropout kernels ---------------- #
def _residual_kernel(x_ref, y_ref, o_ref):
    o_ref[...] = (x_ref[...].astype(jnp.float32)
                  + y_ref[...].astype(jnp.float32)).astype(o_ref.dtype)


def _residual_dropout_kernel(x_ref, y_ref, bits_ref, o_ref, *, threshold, scale):
    x = x_ref[...].astype(jnp.float32)
    y = y_ref[...].astype(jnp.float32)
    keep = bits_ref[...] >= jnp.uint32(threshold)            # P(keep) = 1 - p
    y = jnp.where(keep, y * jnp.float32(scale), 0.0)
    o_ref[...] = (x + y).astype(o_ref.dtype)


def residual_dropout(x, y, *, p, rng=None):
    """out = x + dropout_p(y), computed on a lane-dense (rows, 1024) slab."""
    rows, d = x.shape
    if p >= 1.0:                                             # dropout zeroes y entirely
        return x
    n = rows * d
    drop = p > 0.0
    n_big = 4 if drop else 3                                 # x, y, (bits,), out
    itemsize = max(x.dtype.itemsize, 4)
    needed_rows = _round_up(pl.cdiv(n, _LANE), 8)
    block_rows = _pick_block_rows(_LANE * itemsize, n_big, needed_rows)
    n_pad = _round_up(n, _LANE * block_rows)
    r = n_pad // _LANE

    def to_slab(a):
        flat = a.reshape(-1)
        if n_pad != n:
            flat = jnp.pad(flat, (0, n_pad - n))
        return flat.reshape(r, _LANE)

    xf, yf = to_slab(x), to_slab(y)
    spec = pl.BlockSpec((block_rows, _LANE), lambda i: (i, 0))
    cp = pltpu.CompilerParams(
        dimension_semantics=("parallel",),
        vmem_limit_bytes=_vmem_limit(block_rows, _LANE * itemsize, n_big),
    )

    if drop:
        # RNG generated outside the kernel (portable: pltpu.prng_* is TPU-only);
        # keep test done in the integer domain to save VALU work in-kernel.
        threshold = min(int(round(p * 2.0 ** 32)), 2 ** 32 - 1)
        scale = 1.0 / (1.0 - p)
        if rng is None:
            rng = jax.random.PRNGKey(0)
        bits = jax.random.bits(rng, (r, _LANE), dtype=jnp.uint32)
        kernel = functools.partial(_residual_dropout_kernel,
                                   threshold=threshold, scale=scale)
        out = pl.pallas_call(
            kernel,
            out_shape=jax.ShapeDtypeStruct((r, _LANE), x.dtype),
            grid=(r // block_rows,),
            in_specs=[spec, spec, spec],
            out_specs=spec,
            compiler_params=cp,
        )(xf, yf, bits)
    else:
        out = pl.pallas_call(
            _residual_kernel,
            out_shape=jax.ShapeDtypeStruct((r, _LANE), x.dtype),
            grid=(r // block_rows,),
            in_specs=[spec, spec],
            out_specs=spec,
            compiler_params=cp,
        )(xf, yf)

    out = out.reshape(-1)
    if n_pad != n:
        out = out[:n]
    return out.reshape(rows, d)


# ------------------------------- module wrapper ------------------------------ #
class SublayerConnection:
    """out = x + dropout(sublayer(LayerNorm(x))), norm applied first (pre-norm)."""

    def __init__(self, size, dropout):
        self.size = int(size)
        self.p = float(dropout)
        # deterministic parameter init, same as the PyTorch module
        self.a_2 = jnp.ones((self.size,), jnp.float32)
        self.b_2 = jnp.zeros((self.size,), jnp.float32)

    def __call__(self, x, sublayer, *, training=False, rng=None):
        B, S, D = x.shape
        x2 = x.reshape(B * S, D)
        normed = layernorm(x2, self.a_2, self.b_2).reshape(B, S, D)
        # TODO(synk): when the sublayer is a known matmul, fuse dropout+residual
        # into its output epilogue to save one full HBM pass; here the sublayer
        # is an arbitrary user callable, so it stays plain JAX glue.
        y = sublayer(normed).reshape(B * S, D)
        p = self.p if training else 0.0                      # nn.Dropout is identity in eval
        out = residual_dropout(x2, y, p=p, rng=rng)
        return out.reshape(B, S, D)


# ------------------------------------ demo ----------------------------------- #
if __name__ == "__main__":
    B, S, D = 2, 8, 32
    key = jax.random.PRNGKey(0)
    kx, kw, kb, kd = jax.random.split(key, 4)

    x = jax.random.normal(kx, (B, S, D), jnp.float32)

    # example sublayer: deterministic Linear(D -> D)
    W = jax.random.normal(kw, (D, D), jnp.float32) * 0.05
    bias = jax.random.normal(kb, (D,), jnp.float32) * 0.01
    sublayer = lambda h: jnp.einsum("bsd,de->bse", h, W) + bias

    block = SublayerConnection(size=D, dropout=0.1)

    # eval mode (dropout = identity): verify against a pure-JAX reference
    out_eval = jax.block_until_ready(block(x, sublayer, training=False))

    def ref_forward(x):
        mean = jnp.mean(x, axis=-1, keepdims=True)
        std = jnp.std(x, axis=-1, keepdims=True, ddof=1) + EPS
        normed = block.a_2 * (x - mean) / std + block.b_2
        return x + sublayer(normed)

    ref = ref_forward(x)
    assert jnp.allclose(out_eval, ref, atol=1e-4, rtol=1e-4), "mismatch vs reference"

    # training mode: exercises the in-kernel dropout path (stochastic, just run it)
    out_train = jax.block_until_ready(block(x, sublayer, training=True, rng=kd))
    assert out_train.shape == x.shape and bool(jnp.all(jnp.isfinite(out_train)))

    print("KERNEL_OK")
</pallas_src>

<mosaic_0001>
module attributes {stable_mosaic.version = 11 : i64} {
  func.func @_layernorm_kernel(%arg0: i32, %arg1: memref<16x32xf32, #tpu.memory_space<vmem>>, %arg2: memref<1x32xf32, #tpu.memory_space<vmem>>, %arg3: memref<1x32xf32, #tpu.memory_space<vmem>>, %arg4: memref<16x32xf32, #tpu.memory_space<vmem>>) attributes {dimension_semantics = [#tpu.dimension_semantics<parallel>], iteration_bounds = array<i64: 1>, scalar_prefetch = 0 : i64, scratch_operands = 0 : i64, tpu.core_type = #tpu.core_type<tc>, window_params = [{transform_indices = @transform_0, window_bounds = array<i64: 16, 32>}, {pipeline_mode = #tpu.pipeline_mode<synchronous>, transform_indices = @transform_1, window_bounds = array<i64: 1, 32>}, {pipeline_mode = #tpu.pipeline_mode<synchronous>, transform_indices = @transform_2, window_bounds = array<i64: 1, 32>}, {transform_indices = @transform_3, window_bounds = array<i64: 16, 32>}]} {
    %c0 = arith.constant 0 : index
    %c0_0 = arith.constant 0 : index
    %0 = vector.load %arg1[%c0, %c0_0] : memref<16x32xf32, #tpu.memory_space<vmem>>, vector<16x32xf32>
    %cst = arith.constant dense<0.000000e+00> : vector<16xf32>
    %1 = vector.multi_reduction <add>, %0, %cst [1] : vector<16x32xf32> to vector<16xf32>
    %2 = vector.shape_cast %1 : vector<16xf32> to vector<16x1xf32>
    %cst_1 = arith.constant 3.200000e+01 : f32
    %3 = vector.broadcast %cst_1 : f32 to vector<16x1xf32>
    %4 = arith.divf %2, %3 : vector<16x1xf32>
    %5 = vector.broadcast %4 : vector<16x1xf32> to vector<16x32xf32>
    %6 = arith.subf %0, %5 : vector<16x32xf32>
    %7 = arith.mulf %6, %6 : vector<16x32xf32>
    %cst_2 = arith.constant dense<0.000000e+00> : vector<16xf32>
    %8 = vector.multi_reduction <add>, %7, %cst_2 [1] : vector<16x32xf32> to vector<16xf32>
    %9 = vector.shape_cast %8 : vector<16xf32> to vector<16x1xf32>
    %cst_3 = arith.constant 0.0322580636 : f32
    %10 = vector.broadcast %cst_3 : f32 to vector<16x1xf32>
    %11 = arith.mulf %9, %10 : vector<16x1xf32>
    %12 = math.sqrt %11 : vector<16x1xf32>
    %cst_4 = arith.constant 9.99999997E-7 : f32
    %13 = vector.broadcast %cst_4 : f32 to vector<16x1xf32>
    %14 = arith.addf %12, %13 : vector<16x1xf32>
    %cst_5 = arith.constant 1.000000e+00 : f32
    %15 = vector.broadcast %cst_5 : f32 to vector<16x1xf32>
    %16 = arith.divf %15, %14 : vector<16x1xf32>
    %c0_6 = arith.constant 0 : index
    %c0_7 = arith.constant 0 : index
    %17 = vector.load %arg2[%c0_6, %c0_7] : memref<1x32xf32, #tpu.memory_space<vmem>>, vector<1x32xf32>
    %18 = vector.broadcast %16 : vector<16x1xf32> to vector<16x32xf32>
    %19 = arith.mulf %6, %18 : vector<16x32xf32>
    %20 = vector.broadcast %17 : vector<1x32xf32> to vector<16x32xf32>
    %21 = arith.mulf %20, %19 : vector<16x32xf32>
    %c0_8 = arith.constant 0 : index
    %c0_9 = arith.constant 0 : index
    %22 = vector.load %arg3[%c0_8, %c0_9] : memref<1x32xf32, #tpu.memory_space<vmem>>, vector<1x32xf32>
    %23 = vector.broadcast %22 : vector<1x32xf32> to vector<16x32xf32>
    %24 = arith.addf %21, %23 : vector<16x32xf32>
    %c0_10 = arith.constant 0 : index
    %c0_11 = arith.constant 0 : index
    %25 = vector.load %arg4[%c0_10, %c0_11] : memref<16x32xf32, #tpu.memory_space<vmem>>, vector<16x32xf32>
    tpu.vector_store %arg4[%c0_10, %c0_11], %24 {strides = array<i32>} : memref<16x32xf32, #tpu.memory_space<vmem>>, vector<16x32xf32>,
    return
  }
  func.func @transform_0(%arg0: i32) -> (i32, i32) {
    %c0_i32 = arith.constant 0 : i32
    %c0_i32_0 = arith.constant 0 : i32
    return %arg0, %c0_i32 : i32, i32
  }
  func.func @transform_1(%arg0: i32) -> (i32, i32) {
    %c0_i32 = arith.constant 0 : i32
    %c0_i32_0 = arith.constant 0 : i32
    %c0_i32_1 = arith.constant 0 : i32
    return %c0_i32, %c0_i32_0 : i32, i32
  }
  func.func @transform_2(%arg0: i32) -> (i32, i32) {
    %c0_i32 = arith.constant 0 : i32
    %c0_i32_0 = arith.constant 0 : i32
    %c0_i32_1 = arith.constant 0 : i32
    return %c0_i32, %c0_i32_0 : i32, i32
  }
  func.func @transform_3(%arg0: i32) -> (i32, i32) {
    %c0_i32 = arith.constant 0 : i32
    %c0_i32_0 = arith.constant 0 : i32
    return %arg0, %c0_i32 : i32, i32
  }
}

</mosaic_0001>

<llo_original>
// kernel: tpu_custom_call.1
$region0: #{tpu_custom_call.1}
  #allocation0 [shape = 'u32[]', space=smem, size = 0x4, offset = 0x4, fixed_abs, tag = 'smem constant byte address 0x4 - core index']
  #allocation1 [shape = 'u32[144,128]{1,0:T(1,128)}', space=vmem, size = 0x12000, scoped, tag = 'internal scratch']
  %s0 = inlined_call_operand.hbm [shape: f32[16,32], index: 0, kind: input, shape index: {}]
  %s1 = inlined_call_operand.vmem [shape: f32[1,32], index: 1, kind: input, shape index: {}]
  %s2 = inlined_call_operand.vmem [shape: f32[1,32], index: 2, kind: input, shape index: {}]
  %s3 = inlined_call_operand.hbm [shape: f32[16,32], index: 3, kind: output, shape index: {}]
  %s4 = sld [smem:[#allocation0]]
  $region26: #{tpu_custom_call.1} parent=0
    _
  %s6 = ssub.s32 1, %s4
  %s7 = scalar_select 0, %s6, %s4
  $region1: #{tpu_custom_call.1} parent=0
    #allocation2 [shape = 'u8[8192]{0}', space=vmem, size = 0x2000, scoped, tag = 'input window, operand 0, single buffered']
    #allocation3 [shape = 's32[1]{0}', space=sflag, size = 0x4, scoped, tag = 'scoped memory for tpu_custom_call.1']
    #allocation4 [shape = 's32[1]{0}', space=sflag, size = 0x4, scoped, tag = 'scoped memory for tpu_custom_call.1']
    #allocation5 [shape = 'u8[8192]{0}', space=vmem, size = 0x2000, scoped, tag = 'output window, operand 0, single buffered']
    %8 = vsyncpa [#allocation3], 0
    %9 = vsyncpa [#allocation4], 0
    // Predicated region
    $region2: #{tpu_custom_call.1} parent=1 // pred_check
      _
    $region3: #{tpu_custom_call.1} parent=1 // pred_check_branch
      %11 = sbr.rel (0) target = $region5
    $region4: #{tpu_custom_call.1} parent=1 // pred_region
      %s13 = ssub.s32 256, 256
      %14 = vsyncadd [#allocation3], %s13
      %s15 = sshll.u32 [#allocation2], 4
      %s16 = int_to_ptr.vmem [resolvable:$true] %s15
      %21 = dma.hbm_to_vmem [thread:$0]  %s0, 256, %s16, [#allocation3], 128, 128, 8
    $region5: #{tpu_custom_call.1} parent=1 // pred_fallthru
      _
    // Predicated region
    $region6: #{tpu_custom_call.1} parent=1 // pred_check
      _
    $region7: #{tpu_custom_call.1} parent=1 // pred_check_branch
      %23 = sbr.rel (0) target = $region9
    $region8: #{tpu_custom_call.1} parent=1 // pred_region
      _
    $region9: #{tpu_custom_call.1} parent=1 // pred_fallthru
      _
    // Predicated region
    $region10: #{tpu_custom_call.1} parent=1 // pred_check
      _
    $region11: #{tpu_custom_call.1} parent=1 // pred_check_branch
      %25 = sbr.rel (0) target = $region13
    $region12: #{tpu_custom_call.1} parent=1 // pred_region
      _
    $region13: #{tpu_custom_call.1} parent=1 // pred_fallthru
      _
    // Predicated region
    $region14: #{tpu_custom_call.1} parent=1 // pred_check
      _
    $region15: #{tpu_custom_call.1} parent=1 // pred_check_branch
      %27 = sbr.rel (0) target = $region17
    $region16: #{tpu_custom_call.1} parent=1 // pred_region
      %28 = dma.done [#allocation3], 256
    $region17: #{tpu_custom_call.1} parent=1 // pred_fallthru
      _
    %v29 = vld [vmem:[#allocation2] sm:$0xff]
    %v30 = vld [vmem:[#allocation2 + $0x8] sm:$0xff]
    %vm31 = vcmask 261120
    %v32 = vsel %vm31, %v29, 0.0
    %33 = vadd.xlane.f32.xlu0 %v32
    %v34 = vpop.xlane.xlu0 %33
    %v35 = vsel %vm31, %v30, 0.0
    %36 = vadd.xlane.f32.xlu0 %v35
    %v37 = vpop.xlane.xlu0 %36
    %v38 = vrcp.pop 32.0
    %v39 = vmul.f32 %v34, %v38
    %v40 = vmul.f32 %v37, %v38
    %v41 = vsub.f32 %v29, %v39
    %v42 = vsub.f32 %v30, %v40
    %v43 = vmul.f32 %v41, %v41
    %v44 = vmul.f32 %v42, %v42
    %v45 = vsel %vm31, %v43, 0.0
    %46 = vadd.xlane.f32.xlu0 %v45
    %v47 = vpop.xlane.xlu0 %46
    %v48 = vsel %vm31, %v44, 0.0
    %49 = vadd.xlane.f32.xlu0 %v48
    %v50 = vpop.xlane.xlu0 %49
    %v51 = vmul.f32 %v47, 0.032258064
    %v52 = vmul.f32 %v50, 0.032258064
    %v53 = vrsqrt.pop %v51
    %v54 = vmul.f32 %v51, %v53
    %vm55 = vcmp.eq.f32.partialorder %v51, inf
    %v56 = vsel %vm55, %v51, %v54
    %vm57 = vcmp.eq.f32.partialorder %v51, 0.0
    %v58 = vand.u32 %v51, 2147483648
    %v59 = vsel %vm57, %v58, %v56
    %v60 = vrsqrt.pop %v52
    %v61 = vmul.f32 %v52, %v60
    %vm62 = vcmp.eq.f32.partialorder %v52, inf
    %v63 = vsel %vm62, %v52, %v61
    %vm64 = vcmp.eq.f32.partialorder %v52, 0.0
    %v65 = vand.u32 %v52, 2147483648
    %v66 = vsel %vm64, %v65, %v63
    %v67 = vadd.f32 %v59, 1e-06
    %v68 = vadd.f32 %v66, 1e-06
    %v69 = vrcp.pop %v67
    %v70 = vmul.f32 1.0, %v69
    %v71 = vrcp.pop %v68
    %v72 = vmul.f32 1.0, %v71
    %v73 = vld [vmem:[%s1] sm:$0x1]
    %v74 = vmul.f32 %v41, %v70
    %v75 = vmul.f32 %v42, %v72
    %v77 = vlaneseq
    %v78 = vshrl.u32 %v77, 7
    %v79 = vsub.s32 0, %v78
    %v80 = vrot.slane %v73, %v79
    %v82 = vmul.f32 %v80, %v74
    %v83 = vmul.f32 %v80, %v75
    %v84 = vld [vmem:[%s2] sm:$0x1]
    %v86 = vlaneseq
    %v87 = vshrl.u32 %v86, 7
    %v88 = vsub.s32 0, %v87
    %v89 = vrot.slane %v84, %v88
    %v91 = vadd.f32 %v82, %v89
    %v92 = vadd.f32 %v83, %v89
    %93 = vst.msk [vmem:[#allocation5] sm:$0xff] %vm31, %v91
    %94 = vst.msk [vmem:[#allocation5 + $0x8] sm:$0xff] %vm31, %v92
    // Predicated region
    $region18: #{tpu_custom_call.1} parent=1 // pred_check
      _
    $region19: #{tpu_custom_call.1} parent=1 // pred_check_branch
      %96 = sbr.rel (0) target = $region21
    $region20: #{tpu_custom_call.1} parent=1 // pred_region
      %s98 = ssub.s32 256, 256
      %99 = vsyncadd [#allocation4], %s98
      %s100 = sshll.u32 [#allocation5], 4
      %s101 = int_to_ptr.vmem [resolvable:$true] %s100
      %106 = dma.vmem_to_hbm [thread:$0]  %s101, 256, %s3, [#allocation4], 128, 128, 8
    $region21: #{tpu_custom_call.1} parent=1 // pred_fallthru
      _
    // Predicated region
    $region22: #{tpu_custom_call.1} parent=1 // pred_check
      _
    $region23: #{tpu_custom_call.1} parent=1 // pred_check_branch
      %108 = sbr.rel (0) target = $region25
    $region24: #{tpu_custom_call.1} parent=1 // pred_region
      %109 = dma.done [#allocation4], 256
    $region25: #{tpu_custom_call.1} parent=1 // pred_fallthru
      _
    %110 = vsyncpa [#allocation3], 1
    %111 = vsyncpa [#allocation4], 1

</llo_original>
